<compile_context>
chip_gen: v7x
topology: tpu7x:2x2x1
jax: 0.10.0
libtpu: 0.0.40
codegen_flags: <defaults>
</compile_context>

<pallas_src>
import functools

import jax
import jax.numpy as jnp
from jax.experimental import pallas as pl
from jax.experimental.pallas import tpu as pltpu


def _round_up(x, m):
    return ((x + m - 1) // m) * m


def _cdiv(a, b):
    return -(-a // b)


def nlin_core_kernel(x_ref, w_ref, wc_ref, o_ref, *, c):
    # Single dense MXU matmul: planar x row-tile @ planar-permuted W_mix^T.
    # Operands may be bf16; accumulation is f32.
    mixed = jnp.dot(x_ref[...], w_ref[...],
                    preferred_element_type=jnp.float32)        # (TM, 2C) f32

    # Planar halves: first C lanes = re, last C lanes = im.
    re = mixed[:, :c]
    im = mixed[:, c:]

    # amp, nlin and the per-pair 2x2 coefficient are pure VPU elementwise
    # math (kept in f32), replacing the two structured dense matmuls of the
    # previous version.
    amp = re * re + im * im
    nre = amp * re
    nim = amp * im

    # 2x2 coefficient (nlin @ W_coeff^T) as 4 scalar mul-adds; scalars live
    # in SMEM as [w00, w01, w10, w11].
    w00 = wc_ref[0]
    w01 = wc_ref[1]
    w10 = wc_ref[2]
    w11 = wc_ref[3]
    out_re = w00 * nre + w01 * nim
    out_im = w10 * nre + w11 * nim

    o_ref[...] = jnp.concatenate([out_re, out_im], axis=-1).astype(o_ref.dtype)


def nlin_core_forward(x, w_mix, w_coeff, *, tm=512, matmul_dtype=jnp.bfloat16):
    """x: (B, S, C, 2); w_mix: (2C, 2C); w_coeff: (2, 2). Returns (B, S, C, 2)."""
    b, s, c, two = x.shape
    assert two == 2
    m = b * s
    f = 2 * c

    # ---- host-side (one-time) layout plumbing -------------------------------
    # Planar layout: columns [c0_re .. c_{C-1}_re | c0_im .. c_{C-1}_im].
    x_planar = jnp.transpose(x, (0, 1, 3, 2)).reshape(m, f)
    # Fold the interleaved<->planar permutation into W_mix^T so the kernel's
    # single matmul yields `mixed` already in planar layout.
    perm = jnp.concatenate([2 * jnp.arange(c), 2 * jnp.arange(c) + 1])
    w_eff = w_mix.T[perm][:, perm]

    # ---- row tiling: big tiles, ragged M via zero padding --------------------
    # tm=512 amortizes the ~0.35us per-grid-step overhead; sublane-multiple
    # fallback for small M (e.g. the unit-test shapes).
    tm_eff = min(tm, _round_up(m, 8))
    if m > 256 and _cdiv(m, tm_eff) < 2:
        # Keep >= 2 grid steps so the "parallel" row axis can be sharded
        # across v7x's two TensorCores.
        tm_eff = _round_up(_cdiv(m, 2), 8)
    m_pad = _round_up(m, tm_eff)
    grid = (m_pad // tm_eff,)

    x_p = x_planar.astype(matmul_dtype)
    if m_pad != m:
        x_p = jnp.pad(x_p, ((0, m_pad - m), (0, 0)))   # zero rows -> zero out rows
    w_eff = w_eff.astype(matmul_dtype)
    wc = w_coeff.astype(jnp.float32).reshape(4)        # [w00, w01, w10, w11]

    kernel = functools.partial(nlin_core_kernel, c=c)

    out = pl.pallas_call(
        kernel,
        out_shape=jax.ShapeDtypeStruct((m_pad, f), jnp.float32),
        grid_spec=pl.GridSpec(
            grid=grid,
            in_specs=[
                # x row tile (double-buffered by the auto-pipeline; raise to
                # pipeline_mode=pl.Buffered(3) only if a profile shows
                # exposed DMA at large tm).
                pl.BlockSpec((tm_eff, f), lambda i: (i, 0)),
                # Planar-permuted W_mix^T: constant block index -> fetched
                # once and kept resident across the whole grid.
                pl.BlockSpec((f, f), lambda i: (0, 0)),
                # 2x2 coefficient as 4 scalars in SMEM.
                pl.BlockSpec(memory_space=pltpu.MemorySpace.SMEM),
            ],
            out_specs=pl.BlockSpec((tm_eff, f), lambda i: (i, 0)),
        ),
        compiler_params=pltpu.CompilerParams(
            dimension_semantics=("parallel",),
            # Explicit scoped-VMEM cap (safe on v5e/v6e/v7x).  Actual use at
            # tm=512 is ~2x x-tile + 2x out-tile + resident W_eff, far below.
            vmem_limit_bytes=48 * 1024 * 1024,
        ),
    )(x_p, w_eff, wc)

    # Drop padding rows and fold the inverse permutation into a wrapper
    # reshape/transpose: planar (m, 2C) -> interleaved (b, s, c, 2).
    out = out[:m].reshape(b, s, 2, c)
    return jnp.transpose(out, (0, 1, 3, 2))


def nlin_core_reference(x, w_mix, w_coeff):
    b, s, c, _ = x.shape
    mixed = x.reshape(b * s, c * 2) @ w_mix.T
    mixed = mixed.reshape(b * s, c, 2)
    amp = mixed[..., 0] ** 2 + mixed[..., 1] ** 2
    nlin = amp[..., None] * mixed
    out = nlin.reshape(b * s * c, 2) @ w_coeff.T
    return out.reshape(b, s, c, 2)


if __name__ == "__main__":
    # Small shapes consistent with the module: output_size=2 (re/im pairs),
    # n_channels=4, batch=2, seq(out_window)=8.
    B, S, C = 2, 8, 4
    key = jax.random.PRNGKey(0)
    kx, kmix, kcoef = jax.random.split(key, 3)

    x = jax.random.normal(kx, (B, S, C, 2), dtype=jnp.float32)

    # Deterministic Linear-style init (uniform(-1/sqrt(fan_in), 1/sqrt(fan_in))).
    k_mix = 1.0 / jnp.sqrt(2.0 * C)
    w_mix = jax.random.uniform(kmix, (2 * C, 2 * C), dtype=jnp.float32,
                               minval=-k_mix, maxval=k_mix)
    k_coef = 1.0 / jnp.sqrt(2.0)
    w_coeff = jax.random.uniform(kcoef, (2, 2), dtype=jnp.float32,
                                 minval=-k_coef, maxval=k_coef)

    ref = nlin_core_reference(x, w_mix, w_coeff)

    # Default path: bf16 MXU operands (v6e/v7x recommendation), f32 elementwise.
    out_bf16 = jax.block_until_ready(nlin_core_forward(x, w_mix, w_coeff))
    assert out_bf16.shape == (B, S, C, 2)
    scale = float(jnp.maximum(jnp.max(jnp.abs(ref)), 1.0))
    max_err = float(jnp.max(jnp.abs(out_bf16 - ref)))
    assert max_err <= 5e-2 * scale, f"bf16 path mismatch: {max_err} vs scale {scale}"

    # Full-precision path: tight structural/numerical check of the kernel.
    out_f32 = jax.block_until_ready(
        nlin_core_forward(x, w_mix, w_coeff, matmul_dtype=jnp.float32))
    assert jnp.allclose(out_f32, ref, atol=1e-4, rtol=1e-4), "f32 path mismatch"

    print("KERNEL_OK")
</pallas_src>

<mosaic_0001>
module attributes {stable_mosaic.version = 11 : i64} {
  func.func @nlin_core_kernel(%arg0: i32, %arg1: memref<16x8xbf16, #tpu.memory_space<vmem>>, %arg2: memref<8x8xbf16, #tpu.memory_space<vmem>>, %arg3: memref<4xf32, #tpu.memory_space<smem>>, %arg4: memref<16x8xf32, #tpu.memory_space<vmem>>) attributes {dimension_semantics = [#tpu.dimension_semantics<parallel>], iteration_bounds = array<i64: 1>, scalar_prefetch = 0 : i64, scratch_operands = 0 : i64, tpu.core_type = #tpu.core_type<tc>, window_params = [{transform_indices = @transform_0, window_bounds = array<i64: 16, 8>}, {pipeline_mode = #tpu.pipeline_mode<synchronous>, transform_indices = @transform_1, window_bounds = array<i64: 8, 8>}, {transform_indices = @transform_2, window_bounds = array<i64: 4>}, {transform_indices = @transform_3, window_bounds = array<i64: 16, 8>}]} {
    %c0 = arith.constant 0 : index
    %c0_0 = arith.constant 0 : index
    %0 = vector.load %arg1[%c0, %c0_0] : memref<16x8xbf16, #tpu.memory_space<vmem>>, vector<16x8xbf16>
    %c0_1 = arith.constant 0 : index
    %c0_2 = arith.constant 0 : index
    %1 = vector.load %arg2[%c0_1, %c0_2] : memref<8x8xbf16, #tpu.memory_space<vmem>>, vector<8x8xbf16>
    %cst = arith.constant dense<0.000000e+00> : vector<16x8xf32>
    %2 = tpu.matmul %0, %1, %cst {dimension_numbers = #tpu.dot_dimension_numbers<[1], [0], [0], [1], [0, 0, 1, 1], [], []>} : vector<16x8xbf16>, vector<8x8xbf16>, vector<16x8xf32> -> vector<16x8xf32>
    %3 = vector.extract_strided_slice %2 {offsets = [0, 0], sizes = [16, 4], strides = [1, 1]} : vector<16x8xf32> to vector<16x4xf32>
    %4 = vector.extract_strided_slice %2 {offsets = [0, 4], sizes = [16, 4], strides = [1, 1]} : vector<16x8xf32> to vector<16x4xf32>
    %5 = arith.mulf %3, %3 : vector<16x4xf32>
    %6 = arith.mulf %4, %4 : vector<16x4xf32>
    %7 = arith.addf %5, %6 : vector<16x4xf32>
    %8 = arith.mulf %7, %3 : vector<16x4xf32>
    %9 = arith.mulf %7, %4 : vector<16x4xf32>
    %c0_3 = arith.constant 0 : index
    %10 = memref.load %arg3[%c0_3] : memref<4xf32, #tpu.memory_space<smem>>
    %c1 = arith.constant 1 : index
    %11 = memref.load %arg3[%c1] : memref<4xf32, #tpu.memory_space<smem>>
    %c2 = arith.constant 2 : index
    %12 = memref.load %arg3[%c2] : memref<4xf32, #tpu.memory_space<smem>>
    %c3 = arith.constant 3 : index
    %13 = memref.load %arg3[%c3] : memref<4xf32, #tpu.memory_space<smem>>
    %14 = vector.broadcast %10 : f32 to vector<16x4xf32>
    %15 = arith.mulf %14, %8 : vector<16x4xf32>
    %16 = vector.broadcast %11 : f32 to vector<16x4xf32>
    %17 = arith.mulf %16, %9 : vector<16x4xf32>
    %18 = arith.addf %15, %17 : vector<16x4xf32>
    %19 = vector.broadcast %12 : f32 to vector<16x4xf32>
    %20 = arith.mulf %19, %8 : vector<16x4xf32>
    %21 = vector.broadcast %13 : f32 to vector<16x4xf32>
    %22 = arith.mulf %21, %9 : vector<16x4xf32>
    %23 = arith.addf %20, %22 : vector<16x4xf32>
    %24 = tpu.concatenate %18, %23 in 1 : vector<16x4xf32>, vector<16x4xf32> -> vector<16x8xf32>
    %c0_4 = arith.constant 0 : index
    %c0_5 = arith.constant 0 : index
    %25 = vector.load %arg4[%c0_4, %c0_5] : memref<16x8xf32, #tpu.memory_space<vmem>>, vector<16x8xf32>
    tpu.vector_store %arg4[%c0_4, %c0_5], %24 {strides = array<i32>} : memref<16x8xf32, #tpu.memory_space<vmem>>, vector<16x8xf32>,
    return
  }
  func.func @transform_0(%arg0: i32) -> (i32, i32) {
    %c0_i32 = arith.constant 0 : i32
    %c0_i32_0 = arith.constant 0 : i32
    return %arg0, %c0_i32 : i32, i32
  }
  func.func @transform_1(%arg0: i32) -> (i32, i32) {
    %c0_i32 = arith.constant 0 : i32
    %c0_i32_0 = arith.constant 0 : i32
    %c0_i32_1 = arith.constant 0 : i32
    return %c0_i32, %c0_i32_0 : i32, i32
  }
  func.func @transform_2(%arg0: i32) -> i32 {
    %c0_i32 = arith.constant 0 : i32
    %c0_i32_0 = arith.constant 0 : i32
    return %c0_i32 : i32
  }
  func.func @transform_3(%arg0: i32) -> (i32, i32) {
    %c0_i32 = arith.constant 0 : i32
    %c0_i32_0 = arith.constant 0 : i32
    return %arg0, %c0_i32 : i32, i32
  }
}

</mosaic_0001>

<llo_original>
// kernel: tpu_custom_call.1
$region0: #{tpu_custom_call.1}
  #allocation0 [shape = 'u32[]', space=smem, size = 0x4, offset = 0x4, fixed_abs, tag = 'smem constant byte address 0x4 - core index']
  #allocation1 [shape = 'u32[144,128]{1,0:T(1,128)}', space=vmem, size = 0x12000, scoped, tag = 'internal scratch']
  %s0 = inlined_call_operand.vmem [shape: bf16[16,8], index: 0, kind: input, shape index: {}]
  %s1 = inlined_call_operand.vmem [shape: bf16[8,8], index: 1, kind: input, shape index: {}]
  %s2 = inlined_call_operand.vmem [shape: f32[4], index: 2, kind: input, shape index: {}]
  %s3 = inlined_call_operand.vmem [shape: f32[16,8], index: 3, kind: output, shape index: {}]
  %s4 = sld [smem:[#allocation0]]
  $region26: #{tpu_custom_call.1} parent=0
    _
  %s6 = ssub.s32 1, %s4
  %s7 = scalar_select 0, %s6, %s4
  $region1: #{tpu_custom_call.1} parent=0
    #allocation2 [shape = 'u8[512]{0}', space=smem, size = 0x200, scoped, tag = 'input window, operand 2, single buffered']
    #allocation3 [shape = 's32[1]{0}', space=sflag, size = 0x4, scoped, tag = 'scoped memory for tpu_custom_call.1']
    %8 = vsyncpa [#allocation3], 0
    // Predicated region
    $region2: #{tpu_custom_call.1} parent=1 // pred_check
      _
    $region3: #{tpu_custom_call.1} parent=1 // pred_check_branch
      %10 = sbr.rel (0) target = $region5
    $region4: #{tpu_custom_call.1} parent=1 // pred_region
      _
    $region5: #{tpu_custom_call.1} parent=1 // pred_fallthru
      _
    // Predicated region
    $region6: #{tpu_custom_call.1} parent=1 // pred_check
      _
    $region7: #{tpu_custom_call.1} parent=1 // pred_check_branch
      %12 = sbr.rel (0) target = $region9
    $region8: #{tpu_custom_call.1} parent=1 // pred_region
      _
    $region9: #{tpu_custom_call.1} parent=1 // pred_fallthru
      _
    // Predicated region
    $region10: #{tpu_custom_call.1} parent=1 // pred_check
      _
    $region11: #{tpu_custom_call.1} parent=1 // pred_check_branch
      %14 = sbr.rel (0) target = $region13
    $region12: #{tpu_custom_call.1} parent=1 // pred_region
      %s16 = ssub.s32 16, 16
      %17 = vsyncadd [#allocation3], %s16
      %s19 = sshll.u32 %s2, 4
      %s20 = int_to_ptr.vmem [resolvable:$true] %s19
      %22 = dma.vmem_to_smem %s20, 16, [#allocation2], [#allocation3]
    $region13: #{tpu_custom_call.1} parent=1 // pred_fallthru
      _
    // Predicated region
    $region14: #{tpu_custom_call.1} parent=1 // pred_check
      _
    $region15: #{tpu_custom_call.1} parent=1 // pred_check_branch
      %24 = sbr.rel (0) target = $region17
    $region16: #{tpu_custom_call.1} parent=1 // pred_region
      %25 = dma.done [#allocation3], 16
    $region17: #{tpu_custom_call.1} parent=1 // pred_fallthru
      _
    %26 = sfence
    %v28 = vld [vmem:[%s0] sm:$0xf]
    %v29 = vld [vmem:[%s0 + $0x4] sm:$0xf]
    %v30 = vld [vmem:[%s1] sm:$0xf]
    %v33 = vunpack.c.l.b16 %v28
    %v34 = vunpack.c.l.b16 %v29
    %v35 = vpack.c.b16 %v34, %v33
    %vm36 = vcmask 64512
    %v38 = vsel %vm36, %v35, 0
    %vm40 = vcmask 1043456
    %v42 = vsel %vm40, %v30, 0
    %44 = vmatprep.subr.bf16.mxu0 0
    %45 = vmatpush1.bf16.msra.mxu0 %v42
    %46 = vmatprep.subr.bf16.mxu0 0
    %47 = vmatpush1.bf16.msra.mxu0 0
    %48 = vmatprep.subr.bf16.mxu0 0
    %49 = vmatpush1.bf16.msra.mxu0 0
    %50 = vmatprep.subr.bf16.mxu0 0
    %51 = vmatpush1.bf16.msra.mxu0 0
    %52 = vmatprep.subr.bf16.mxu0 0
    %53 = vmatpush1.bf16.msra.mxu0 0
    %54 = vmatprep.subr.bf16.mxu0 0
    %55 = vmatpush1.bf16.msra.mxu0 0
    %56 = vmatprep.subr.bf16.mxu0 0
    %57 = vmatpush1.bf16.msra.mxu0 0
    %58 = vmatprep.subr.bf16.mxu0 0
    %59 = vmatpush1.bf16.msra.mxu0 0
    %60 = vmatprep.subr.bf16.mxu0 0
    %61 = vmatpush1.bf16.msra.mxu0 0
    %62 = vmatprep.subr.bf16.mxu0 0
    %63 = vmatpush1.bf16.msra.mxu0 0
    %64 = vmatprep.subr.bf16.mxu0 0
    %65 = vmatpush1.bf16.msra.mxu0 0
    %66 = vmatprep.subr.bf16.mxu0 0
    %67 = vmatpush1.bf16.msra.mxu0 0
    %68 = vmatprep.subr.bf16.mxu0 0
    %69 = vmatpush1.bf16.msra.mxu0 0
    %70 = vmatprep.subr.bf16.mxu0 0
    %71 = vmatpush1.bf16.msra.mxu0 0
    %72 = vmatprep.subr.bf16.mxu0 0
    %73 = vmatpush1.bf16.msra.mxu0 0
    %74 = vmatprep.subr.bf16.mxu0 0
    %75 = vmatpush1.bf16.msra.mxu0 0
    %76 = vmatprep.mubr.bf16.mxu0 0
    %77 = vmatmul.mubr.bf16.gmra.mrb[0].mxu0 %v38
    %v78 = vpop.f32.mrb[0].mxu0
    %v79 = vadd.f32 0.0, %v78
    %v80 = vpop.f32.mrb[0].mxu0
    %v81 = vpop.f32.mrb[0].mxu0
    %v82 = vadd.f32 0.0, %v81
    %v83 = vpop.f32.mrb[0].mxu0
    %84 = vdwg.mxu0
    %v85 = vmul.f32 %v79, %v79
    %v86 = vmul.f32 %v82, %v82
    %89 = vrot.lane.b32.xlu0 %v85, 124
    %v90 = vpop.permute.xlu0 %89
    %91 = vrot.lane.b32.xlu0 %v86, 124
    %v92 = vpop.permute.xlu0 %91
    %v95 = vadd.f32 %v85, %v90
    %v96 = vadd.f32 %v86, %v92
    %v97 = vmul.f32 %v95, %v79
    %v98 = vmul.f32 %v96, %v82
    %101 = vrot.lane.b32.xlu0 %v79, 124
    %v102 = vpop.permute.xlu0 %101
    %103 = vrot.lane.b32.xlu0 %v82, 124
    %v104 = vpop.permute.xlu0 %103
    %v107 = vmul.f32 %v95, %v102
    %v108 = vmul.f32 %v96, %v104
    %s109 = sld [smem:[#allocation2]]
    %s110 = sld [smem:[#allocation2 + $0x1]]
    %s111 = sld [smem:[#allocation2 + $0x2]]
    %s112 = sld [smem:[#allocation2 + $0x3]]
    %v113 = vstv %s109
    %v114 = vmul.f32 %v113, %v97
    %v115 = vmul.f32 %v113, %v98
    %v116 = vstv %s110
    %v117 = vmul.f32 %v116, %v107
    %v118 = vmul.f32 %v116, %v108
    %v119 = vadd.f32 %v114, %v117
    %v120 = vadd.f32 %v115, %v118
    %v121 = vstv %s111
    %v122 = vmul.f32 %v121, %v97
    %v123 = vmul.f32 %v121, %v98
    %v124 = vstv %s112
    %v125 = vmul.f32 %v124, %v107
    %v126 = vmul.f32 %v124, %v108
    %v127 = vadd.f32 %v122, %v125
    %v128 = vadd.f32 %v123, %v126
    %131 = vrot.lane.b32.xlu0 %v127, 4
    %v132 = vpop.permute.xlu0 %131
    %133 = vrot.lane.b32.xlu0 %v128, 4
    %v134 = vpop.permute.xlu0 %133
    %vm137 = vcmask 31744
    %v138 = vsel %vm137, %v119, %v132
    %v139 = vsel %vm137, %v120, %v134
    %140 = vst.msk [vmem:[%s3] sm:$0xff] %vm36, %v138
    %141 = vst.msk [vmem:[%s3 + $0x8] sm:$0xff] %vm36, %v139
    // Predicated region
    $region18: #{tpu_custom_call.1} parent=1 // pred_check
      _
    $region19: #{tpu_custom_call.1} parent=1 // pred_check_branch
      %143 = sbr.rel (0) target = $region21
    $region20: #{tpu_custom_call.1} parent=1 // pred_region
      _
    $region21: #{tpu_custom_call.1} parent=1 // pred_fallthru
      _
    // Predicated region
    $region22: #{tpu_custom_call.1} parent=1 // pred_check
      _
    $region23: #{tpu_custom_call.1} parent=1 // pred_check_branch
      %145 = sbr.rel (0) target = $region25
    $region24: #{tpu_custom_call.1} parent=1 // pred_region
      _
    $region25: #{tpu_custom_call.1} parent=1 // pred_fallthru
      _
    %146 = vsyncpa [#allocation3], 1

</llo_original>
